<compile_context>
chip_gen: v6e
topology: v6e:2x2x1
jax: 0.10.0
libtpu: 0.0.40
codegen_flags: <defaults>
</compile_context>

<pallas_src>
import jax
import jax.numpy as jnp
from jax.experimental import pallas as pl
from jax.experimental.pallas import tpu as pltpu

_LANE = 128
# ~2 MiB blocks: in + out, double-buffered = ~8 MiB live VMEM, comfortably under
# the scoped-VMEM defaults on v5e (16 MiB), v6e (32 MiB) and v7x (32 MiB).
_TARGET_BLOCK_BYTES = 2 * 1024 * 1024


def _identity_kernel(x_ref, o_ref):
    # Pure pass-through: copy the whole VMEM tile to the (aliased) output tile.
    o_ref[...] = x_ref[...]


def identity(x):
    """Identity forward: returns x unchanged.

    Perf changes vs. the previous version (per review):
      * input_output_aliases={0: 0} -- output aliases the input buffer, so no
        extra output allocation (and XLA can elide the copy when the input is
        donated / fused away).
      * No jnp.pad, no trailing [:n] slice, no redundant .astype -- those were
        extra full-array HBM passes.  Sizes that cannot be tiled without
        padding are returned directly (identity is exact either way).
      * Large lane-dense blocks: widest last dim that is a multiple of 128 and
        evenly tiles the flat array, ~2 MiB per block, pl.cdiv grid (no
        divisor-search loop that could degenerate to 8-row tiles).
      * Dtype-aware sublane alignment: 8 rows (4-byte), 16 (2-byte), 32 (1-byte).
      * Empty-input / unsupported-dtype guard (previous version divided by zero
        for n == 0).
    """
    n = x.size
    itemsize = jnp.dtype(x.dtype).itemsize

    # Degenerate / unsupported-layout cases: returning x is exactly correct.
    if n == 0 or itemsize not in (1, 2, 4) or x.dtype == jnp.bool_:
        return x

    # Dtype-aware sublane packing (rows per packed vreg).
    sub = 8 * (4 // itemsize)          # 8 (f32/i32), 16 (bf16), 32 (i8/fp8)

    # Widest lane-dense last dim (multiple of 128) that tiles the flat array
    # with sublane-aligned rows -- no padding, no slice-back.
    rows = cols = None
    for cand in (4096, 2048, 1024, 512, 256, _LANE):
        if n % (sub * cand) == 0:
            cols = cand
            rows = n // cand
            break
    if cols is None:
        # Awkward size: skip the kernel rather than pay pad + slice HBM passes.
        return x

    # ~2 MiB per block, rounded to the sublane multiple, capped at full extent.
    rows_per_block = max(sub, (_TARGET_BLOCK_BYTES // (cols * itemsize)) // sub * sub)
    rows_per_block = min(rows, rows_per_block)

    x2d = x.reshape(rows, cols)
    grid = (pl.cdiv(rows, rows_per_block),)

    # TODO(synk): on v7x, CORE_PARALLEL dimension semantics would shard this
    # copy across both TensorCores; "parallel" kept for portability.
    out2d = pl.pallas_call(
        _identity_kernel,
        out_shape=jax.ShapeDtypeStruct((rows, cols), x2d.dtype),
        grid_spec=pltpu.PrefetchScalarGridSpec(
            num_scalar_prefetch=0,
            grid=grid,
            in_specs=[pl.BlockSpec((rows_per_block, cols), lambda i: (i, 0))],
            out_specs=pl.BlockSpec((rows_per_block, cols), lambda i: (i, 0)),
        ),
        input_output_aliases={0: 0},
        compiler_params=pltpu.CompilerParams(
            dimension_semantics=("parallel",)),
    )(x2d)

    return out2d.reshape(x.shape)


if __name__ == "__main__":
    key = jax.random.PRNGKey(0)
    x = jax.random.normal(key, (2, 4, 16, 16), dtype=jnp.float32)  # NCHW
    y = identity(x)
    jax.block_until_ready(y)
    assert y.shape == x.shape and y.dtype == x.dtype
    assert bool(jnp.all(y == x))
    print("KERNEL_OK")
</pallas_src>

<mosaic_0001>
module attributes {stable_mosaic.version = 11 : i64} {
  func.func @_identity_kernel(%arg0: i32, %arg1: memref<8x256xf32, #tpu.memory_space<vmem>>, %arg2: memref<8x256xf32, #tpu.memory_space<vmem>>) attributes {dimension_semantics = [#tpu.dimension_semantics<parallel>], iteration_bounds = array<i64: 1>, scalar_prefetch = 0 : i64, scratch_operands = 0 : i64, tpu.core_type = #tpu.core_type<tc>, window_params = [{transform_indices = @transform_0, window_bounds = array<i64: 8, 256>}, {transform_indices = @transform_1, window_bounds = array<i64: 8, 256>}]} {
    %c0 = arith.constant 0 : index
    %c0_0 = arith.constant 0 : index
    %0 = vector.load %arg1[%c0, %c0_0] : memref<8x256xf32, #tpu.memory_space<vmem>>, vector<8x256xf32>
    %c0_1 = arith.constant 0 : index
    %c0_2 = arith.constant 0 : index
    %1 = vector.load %arg2[%c0_1, %c0_2] : memref<8x256xf32, #tpu.memory_space<vmem>>, vector<8x256xf32>
    tpu.vector_store %arg2[%c0_1, %c0_2], %0 {strides = array<i32>} : memref<8x256xf32, #tpu.memory_space<vmem>>, vector<8x256xf32>,
    return
  }
  func.func @transform_0(%arg0: i32) -> (i32, i32) {
    %c0_i32 = arith.constant 0 : i32
    %c0_i32_0 = arith.constant 0 : i32
    return %arg0, %c0_i32 : i32, i32
  }
  func.func @transform_1(%arg0: i32) -> (i32, i32) {
    %c0_i32 = arith.constant 0 : i32
    %c0_i32_0 = arith.constant 0 : i32
    return %arg0, %c0_i32 : i32, i32
  }
}

</mosaic_0001>

<llo_original>
// kernel: tpu_custom_call.1
$region0: #{tpu_custom_call.1}
  #allocation0 [shape = 'u32[]', space=smem, size = 0x4, offset = 0x4, fixed_abs, tag = 'smem constant byte address 0x4 - core index']
  #allocation1 [shape = 'u32[144,128]{1,0:T(1,128)}', space=vmem, size = 0x12000, scoped, tag = 'internal scratch']
  %s0 = inlined_call_operand.hbm [shape: f32[8,256], index: 0, kind: input, shape index: {}, may-alias: {0,1}]
  %s1 = inlined_call_operand.hbm [shape: f32[8,256], index: 1, kind: output, shape index: {}, may-alias: {0,1}]
  %s2 = sld [smem:[#allocation0]]
  $region18: #{tpu_custom_call.1} parent=0
    _
  %s4 = ssub.s32 1, %s2
  %s5 = scalar_select 0, %s4, %s2
  $region1: #{tpu_custom_call.1} parent=0
    #allocation2 [shape = 'u8[8192]{0}', space=vmem, size = 0x2000, scoped, tag = 'input window, operand 0, single buffered']
    #allocation3 [shape = 's32[1]{0}', space=sflag, size = 0x4, scoped, tag = 'scoped memory for tpu_custom_call.1']
    #allocation4 [shape = 's32[1]{0}', space=sflag, size = 0x4, scoped, tag = 'scoped memory for tpu_custom_call.1']
    #allocation5 [shape = 'u8[8192]{0}', space=vmem, size = 0x2000, scoped, tag = 'output window, operand 0, single buffered']
    %6 = vsyncpa [#allocation3], 0
    %7 = vsyncpa [#allocation4], 0
    // Predicated region
    $region2: #{tpu_custom_call.1} parent=1 // pred_check
      _
    $region3: #{tpu_custom_call.1} parent=1 // pred_check_branch
      %9 = sbr.rel (0) target = $region5
    $region4: #{tpu_custom_call.1} parent=1 // pred_region
      %s11 = ssub.s32 256, 256
      %12 = vsyncadd [#allocation3], %s11
      %s14 = sshll.u32 [#allocation2], 4
      %s15 = int_to_ptr.vmem [resolvable:$true] %s14
      %17 = dma.hbm_to_vmem [thread:$0]  %s0, 256, %s15, [#allocation3]
    $region5: #{tpu_custom_call.1} parent=1 // pred_fallthru
      _
    // Predicated region
    $region6: #{tpu_custom_call.1} parent=1 // pred_check
      _
    $region7: #{tpu_custom_call.1} parent=1 // pred_check_branch
      %19 = sbr.rel (0) target = $region9
    $region8: #{tpu_custom_call.1} parent=1 // pred_region
      %20 = dma.done [#allocation3], 256
    $region9: #{tpu_custom_call.1} parent=1 // pred_fallthru
      _
    %v21 = vld [vmem:[#allocation2] sm:$0xff]
    %v22 = vld [vmem:[#allocation2 + $0x8] sm:$0xff]
    %23 = vst [vmem:[#allocation5] sm:$0xff] %v21
    %24 = vst [vmem:[#allocation5 + $0x8] sm:$0xff] %v22
    // Predicated region
    $region10: #{tpu_custom_call.1} parent=1 // pred_check
      _
    $region11: #{tpu_custom_call.1} parent=1 // pred_check_branch
      %26 = sbr.rel (0) target = $region13
    $region12: #{tpu_custom_call.1} parent=1 // pred_region
      %s28 = ssub.s32 256, 256
      %29 = vsyncadd [#allocation4], %s28
      %s31 = sshll.u32 [#allocation5], 4
      %s32 = int_to_ptr.vmem [resolvable:$true] %s31
      %34 = dma.vmem_to_hbm [thread:$0]  %s32, 256, %s1, [#allocation4]
    $region13: #{tpu_custom_call.1} parent=1 // pred_fallthru
      _
    // Predicated region
    $region14: #{tpu_custom_call.1} parent=1 // pred_check
      _
    $region15: #{tpu_custom_call.1} parent=1 // pred_check_branch
      %36 = sbr.rel (0) target = $region17
    $region16: #{tpu_custom_call.1} parent=1 // pred_region
      %37 = dma.done [#allocation4], 256
    $region17: #{tpu_custom_call.1} parent=1 // pred_fallthru
      _
    %38 = vsyncpa [#allocation3], 1
    %39 = vsyncpa [#allocation4], 1

</llo_original>
